<compile_context>
chip_gen: v7x
topology: tpu7x:2x2x1
jax: 0.10.0
libtpu: 0.0.40
codegen_flags: <defaults>
</compile_context>

<pallas_src>
import functools
from collections import namedtuple

import numpy as np
import jax
import jax.numpy as jnp
from jax.experimental import pallas as pl
from jax.experimental.pallas import tpu as pltpu

LANE = 128

_Level = namedtuple("_Level", "c off hw tile nblk inv_hw needs_mask")


def _round_up(x, m):
    return (x + m - 1) // m * m


def _pick_hw_tile(n, c, hw, dtype_bytes, budget_bytes=2 * 1024 * 1024):
    """Spatial tile (lane axis) per level: full extent if it fits the per-buffer
    budget, else the largest multiple of 128 that does (>=128). Budget is sized so
    double-buffered tiles stay far below the v7x 32 MiB scoped-VMEM default."""
    if n * c * hw * dtype_bytes <= budget_bytes:
        return hw
    t = (budget_bytes // (n * c * dtype_bytes)) // LANE * LANE
    return max(int(t), LANE)


def _make_fused_kernel(levels, total_steps):
    num_levels = len(levels)

    def kernel(blk_ref, lvl_ref, vlen_ref, *refs):
        # refs = per-level inputs, then weight, bias, output, accumulator scratch.
        x_refs = refs[:num_levels]
        w_ref, b_ref, o_ref, acc_ref = refs[num_levels:]
        t = pl.program_id(0)

        @pl.when(t == 0)
        def _init():
            acc_ref[...] = jnp.zeros_like(acc_ref)

        lvl = lvl_ref[t]          # which FPN level this step belongs to
        vlen = vlen_ref[t]        # valid spatial elements in this tile

        for i, m in enumerate(levels):
            def _accum(i=i, m=m):
                x = x_refs[i][...].astype(jnp.float32)          # (N, C_i, tile_i)
                if m.needs_mask:
                    pos = jax.lax.broadcasted_iota(jnp.int32, x.shape, 2)
                    x = jnp.where(pos < vlen, x, 0.0)
                # Partial sum over this spatial tile, pre-scaled by 1/(H*W)
                # (precomputed constant -> plain VPU multiply, no divide).
                part = jnp.sum(x, axis=-1) * np.float32(m.inv_hw)   # (N, C_i)
                acc_ref[:, m.off:m.off + m.c] += part
            pl.when(lvl == i)(_accum)

        @pl.when(t == total_steps - 1)
        def _finalize():
            o_ref[...] = (
                jnp.dot(acc_ref[...], w_ref[...],
                        preferred_element_type=jnp.float32)
                + b_ref[...]
            ).astype(o_ref.dtype)

    return kernel


def pad_linear_params(weight, bias, in_channels):
    """PyTorch-layout weight (K, C_total) and bias (K,) -> lane-dense, zero-padded
    (C_pad, K_pad) f32 transposed weight and (1, K_pad) bias. Do this ONCE, outside
    the per-call path (no per-call transpose / reshape copies)."""
    k, c = weight.shape
    assert c == in_channels
    c_pad = _round_up(c, LANE)
    k_pad = _round_up(k, LANE)
    w_pad = jnp.zeros((c_pad, k_pad), jnp.float32).at[:c, :k].set(
        weight.T.astype(jnp.float32))
    b_pad = jnp.zeros((1, k_pad), jnp.float32).at[0, :k].set(
        bias.astype(jnp.float32))
    return w_pad, b_pad


@functools.partial(jax.jit, static_argnames=("out_dim",))
def classification_head_forward(features, w_pad, b_pad, *, out_dim):
    """Fused pool-per-level -> concat -> linear.

    features: list of (N, C_i, H_i, W_i) arrays (FPN levels, high -> low res)
    w_pad:    (C_pad, K_pad) pre-transposed / zero-padded linear weight
    b_pad:    (1, K_pad)     zero-padded bias
    returns:  (N, out_dim) logits
    """
    n = features[0].shape[0]

    # ---- static per-level metadata + lane-major spatial reshape (glue only) ----
    levels = []
    xs = []
    off = 0
    for f in features:
        _, c, h, w = f.shape
        hw = h * w
        tile = _pick_hw_tile(n, c, hw, f.dtype.itemsize)
        nblk = -(-hw // tile)
        levels.append(_Level(c=c, off=off, hw=hw, tile=tile, nblk=nblk,
                             inv_hw=1.0 / hw, needs_mask=(hw % tile != 0)))
        xs.append(f.reshape(n, c, hw))
        off += c
    c_total = off
    num_levels = len(levels)
    c_pad, k_pad = w_pad.shape
    assert c_pad >= c_total, "padded weight smaller than total channels"

    # ---- static schedule: one grid step per (level, spatial tile) -------------
    step_lvl, step_vlen = [], []
    step_pairs = []
    for i, m in enumerate(levels):
        for b in range(m.nblk):
            step_pairs.append((i, b))
            step_lvl.append(i)
            step_vlen.append(min(m.tile, m.hw - b * m.tile))
    total_steps = len(step_pairs)

    # Per-level "held" block index per step: changes only while that level is
    # active, so Pallas re-DMAs a level's tile only when it actually advances.
    blk_np = np.zeros((num_levels, total_steps), np.int32)
    for i in range(num_levels):
        cur = 0
        for t, (j, b) in enumerate(step_pairs):
            if j == i:
                cur = b
            blk_np[i, t] = cur

    blk_arr = jnp.asarray(blk_np.reshape(-1))                    # (L*T,) int32
    lvl_arr = jnp.asarray(np.asarray(step_lvl, np.int32))        # (T,)
    vlen_arr = jnp.asarray(np.asarray(step_vlen, np.int32))      # (T,)

    # ---- BlockSpecs -----------------------------------------------------------
    def _level_spec(i, m):
        return pl.BlockSpec(
            (n, m.c, m.tile),
            lambda t, blk, lvl, vlen, i=i, T=total_steps: (0, 0, blk[i * T + t]))

    in_specs = [_level_spec(i, m) for i, m in enumerate(levels)]
    in_specs.append(pl.BlockSpec((c_pad, k_pad), lambda t, *_: (0, 0)))  # weight
    in_specs.append(pl.BlockSpec((1, k_pad), lambda t, *_: (0, 0)))      # bias
    out_spec = pl.BlockSpec((n, k_pad), lambda t, *_: (0, 0))

    grid_spec = pltpu.PrefetchScalarGridSpec(
        num_scalar_prefetch=3,
        grid=(total_steps,),
        in_specs=in_specs,
        out_specs=out_spec,
        scratch_shapes=[pltpu.VMEM((n, c_pad), jnp.float32)],   # pooled accumulator
    )

    kernel = _make_fused_kernel(tuple(levels), total_steps)

    out = pl.pallas_call(
        kernel,
        out_shape=jax.ShapeDtypeStruct((n, k_pad), jnp.float32),
        grid_spec=grid_spec,
        compiler_params=pltpu.CompilerParams(
            # The single grid axis is the carried (level, spatial) reduction.
            dimension_semantics=("arbitrary",),
        ),
    )(blk_arr, lvl_arr, vlen_arr, *xs, w_pad, b_pad)

    return out[:, :out_dim]


# ------------------------------ Reference ---------------------------------- #

def classification_head_ref(features, weight, bias):
    xs = [jnp.mean(f, axis=(2, 3)) for f in features]
    ff = jnp.concatenate(xs, axis=1)
    return ff @ weight.T + bias


# --------------------------------- Main ------------------------------------ #

if __name__ == "__main__":
    key = jax.random.PRNGKey(0)

    # Config (synthetic): softmax activation -> num_classes + 1 outputs.
    num_classes = 10
    activation = "softmax"
    out_dim = num_classes + 1 if activation == "softmax" else num_classes

    # Small FPN-like feature maps, NCHW (high -> low resolution).
    k1, k2, kw, kb = jax.random.split(key, 4)
    f0 = jax.random.normal(k1, (2, 4, 16, 16), dtype=jnp.float32)
    f1 = jax.random.normal(k2, (2, 8, 8, 8), dtype=jnp.float32)
    features = [f0, f1]
    in_channels = f0.shape[1] + f1.shape[1]  # 12

    # Deterministic param init (nn.init.normal_(w, std=0.01); small uniform bias).
    weight = 0.01 * jax.random.normal(kw, (out_dim, in_channels), dtype=jnp.float32)
    bound = 1.0 / float(np.sqrt(in_channels))
    bias = jax.random.uniform(kb, (out_dim,), dtype=jnp.float32,
                              minval=-bound, maxval=bound)

    # Pad / transpose the linear params ONCE, outside the per-call path.
    w_pad, b_pad = pad_linear_params(weight, bias, in_channels)

    logits = classification_head_forward(features, w_pad, b_pad, out_dim=out_dim)
    logits = jax.block_until_ready(logits)

    ref = classification_head_ref(features, weight, bias)
    assert logits.shape == (2, out_dim), logits.shape
    max_err = float(jnp.max(jnp.abs(logits - ref)))
    assert jnp.allclose(logits, ref, atol=1e-5, rtol=1e-5), f"max abs err {max_err}"

    print("KERNEL_OK")
</pallas_src>

<mosaic_0001>
module attributes {stable_mosaic.version = 11 : i64} {
  func.func @kernel(%arg0: i32, %arg1: memref<4xi32, #tpu.memory_space<smem>>, %arg2: memref<2xi32, #tpu.memory_space<smem>>, %arg3: memref<2xi32, #tpu.memory_space<smem>>, %arg4: memref<2x4x256xf32, #tpu.memory_space<vmem>>, %arg5: memref<2x8x64xf32, #tpu.memory_space<vmem>>, %arg6: memref<128x128xf32, #tpu.memory_space<vmem>>, %arg7: memref<1x128xf32, #tpu.memory_space<vmem>>, %arg8: memref<2x128xf32, #tpu.memory_space<vmem>>, %arg9: memref<2x128xf32, #tpu.memory_space<vmem>>) attributes {dimension_semantics = [#tpu.dimension_semantics<arbitrary>], iteration_bounds = array<i64: 2>, scalar_prefetch = 3 : i64, scratch_operands = 1 : i64, tpu.core_type = #tpu.core_type<tc>, window_params = [{transform_indices = @transform_0, window_bounds = array<i64: 2, 4, 256>}, {transform_indices = @transform_1, window_bounds = array<i64: 2, 8, 64>}, {pipeline_mode = #tpu.pipeline_mode<synchronous>, transform_indices = @transform_2, window_bounds = array<i64: 128, 128>}, {pipeline_mode = #tpu.pipeline_mode<synchronous>, transform_indices = @transform_3, window_bounds = array<i64: 1, 128>}, {pipeline_mode = #tpu.pipeline_mode<synchronous>, transform_indices = @transform_4, window_bounds = array<i64: 2, 128>}]} {
    %c0_i32 = arith.constant 0 : i32
    %0 = arith.cmpi eq, %arg0, %c0_i32 : i32
    %1 = arith.extui %0 : i1 to i32
    %c0_i32_0 = arith.constant 0 : i32
    %2 = arith.cmpi ne, %1, %c0_i32_0 : i32
    scf.if %2 {
      %cst = arith.constant 0.000000e+00 : f32
      %14 = vector.broadcast %cst : f32 to vector<2x128xf32>
      %c0 = arith.constant 0 : index
      %c0_6 = arith.constant 0 : index
      %15 = vector.load %arg9[%c0, %c0_6] : memref<2x128xf32, #tpu.memory_space<vmem>>, vector<2x128xf32>
      tpu.vector_store %arg9[%c0, %c0_6], %14 {strides = array<i32>} : memref<2x128xf32, #tpu.memory_space<vmem>>, vector<2x128xf32>,
    } else {
    }
    %3 = arith.index_cast %arg0 : i32 to index
    %4 = memref.load %arg2[%3] : memref<2xi32, #tpu.memory_space<smem>>
    %c0_i32_1 = arith.constant 0 : i32
    %5 = arith.cmpi eq, %4, %c0_i32_1 : i32
    %6 = arith.extui %5 : i1 to i32
    %c0_i32_2 = arith.constant 0 : i32
    %7 = arith.cmpi ne, %6, %c0_i32_2 : i32
    scf.if %7 {
      %c0 = arith.constant 0 : index
      %c0_6 = arith.constant 0 : index
      %c0_7 = arith.constant 0 : index
      %14 = vector.load %arg4[%c0, %c0_6, %c0_7] : memref<2x4x256xf32, #tpu.memory_space<vmem>>, vector<2x4x256xf32>
      %cst = arith.constant dense<0.000000e+00> : vector<2x4xf32>
      %15 = vector.multi_reduction <add>, %14, %cst [2] : vector<2x4x256xf32> to vector<2x4xf32>
      %cst_8 = arith.constant 3.906250e-03 : f32
      %16 = vector.broadcast %cst_8 : f32 to vector<2x4xf32>
      %17 = arith.mulf %15, %16 : vector<2x4xf32>
      %c0_9 = arith.constant 0 : index
      %c0_10 = arith.constant 0 : index
      %18 = vector.load %arg9[%c0_9, %c0_10] : memref<2x128xf32, #tpu.memory_space<vmem>>, vector<2x4xf32>
      %19 = arith.addf %18, %17 : vector<2x4xf32>
      %c0_11 = arith.constant 0 : index
      %c0_12 = arith.constant 0 : index
      %20 = vector.load %arg9[%c0_11, %c0_12] : memref<2x128xf32, #tpu.memory_space<vmem>>, vector<2x4xf32>
      tpu.vector_store %arg9[%c0_11, %c0_12], %19 {strides = array<i32>} : memref<2x128xf32, #tpu.memory_space<vmem>>, vector<2x4xf32>,
    } else {
    }
    %c1_i32 = arith.constant 1 : i32
    %8 = arith.cmpi eq, %4, %c1_i32 : i32
    %9 = arith.extui %8 : i1 to i32
    %c0_i32_3 = arith.constant 0 : i32
    %10 = arith.cmpi ne, %9, %c0_i32_3 : i32
    scf.if %10 {
      %c0 = arith.constant 0 : index
      %c0_6 = arith.constant 0 : index
      %c0_7 = arith.constant 0 : index
      %14 = vector.load %arg5[%c0, %c0_6, %c0_7] : memref<2x8x64xf32, #tpu.memory_space<vmem>>, vector<2x8x64xf32>
      %cst = arith.constant dense<0.000000e+00> : vector<2x8xf32>
      %15 = vector.multi_reduction <add>, %14, %cst [2] : vector<2x8x64xf32> to vector<2x8xf32>
      %cst_8 = arith.constant 1.562500e-02 : f32
      %16 = vector.broadcast %cst_8 : f32 to vector<2x8xf32>
      %17 = arith.mulf %15, %16 : vector<2x8xf32>
      %c0_9 = arith.constant 0 : index
      %c4 = arith.constant 4 : index
      %18 = vector.load %arg9[%c0_9, %c4] : memref<2x128xf32, #tpu.memory_space<vmem>>, vector<2x8xf32>
      %19 = arith.addf %18, %17 : vector<2x8xf32>
      %c0_10 = arith.constant 0 : index
      %c4_11 = arith.constant 4 : index
      %20 = vector.load %arg9[%c0_10, %c4_11] : memref<2x128xf32, #tpu.memory_space<vmem>>, vector<2x8xf32>
      tpu.vector_store %arg9[%c0_10, %c4_11], %19 {strides = array<i32>} : memref<2x128xf32, #tpu.memory_space<vmem>>, vector<2x8xf32>,
    } else {
    }
    %c1_i32_4 = arith.constant 1 : i32
    %11 = arith.cmpi eq, %arg0, %c1_i32_4 : i32
    %12 = arith.extui %11 : i1 to i32
    %c0_i32_5 = arith.constant 0 : i32
    %13 = arith.cmpi ne, %12, %c0_i32_5 : i32
    scf.if %13 {
      %c0 = arith.constant 0 : index
      %c0_6 = arith.constant 0 : index
      %14 = vector.load %arg9[%c0, %c0_6] : memref<2x128xf32, #tpu.memory_space<vmem>>, vector<2x128xf32>
      %c0_7 = arith.constant 0 : index
      %c0_8 = arith.constant 0 : index
      %15 = vector.load %arg6[%c0_7, %c0_8] : memref<128x128xf32, #tpu.memory_space<vmem>>, vector<128x128xf32>
      %cst = arith.constant dense<0.000000e+00> : vector<2x128xf32>
      %16 = tpu.matmul %14, %15, %cst {dimension_numbers = #tpu.dot_dimension_numbers<[1], [0], [0], [1], [0, 0, 1, 1], [], []>} : vector<2x128xf32>, vector<128x128xf32>, vector<2x128xf32> -> vector<2x128xf32>
      %c0_9 = arith.constant 0 : index
      %c0_10 = arith.constant 0 : index
      %17 = vector.load %arg7[%c0_9, %c0_10] : memref<1x128xf32, #tpu.memory_space<vmem>>, vector<1x128xf32>
      %18 = vector.broadcast %17 : vector<1x128xf32> to vector<2x128xf32>
      %19 = arith.addf %16, %18 : vector<2x128xf32>
      %c0_11 = arith.constant 0 : index
      %c0_12 = arith.constant 0 : index
      %20 = vector.load %arg8[%c0_11, %c0_12] : memref<2x128xf32, #tpu.memory_space<vmem>>, vector<2x128xf32>
      tpu.vector_store %arg8[%c0_11, %c0_12], %19 {strides = array<i32>} : memref<2x128xf32, #tpu.memory_space<vmem>>, vector<2x128xf32>,
    } else {
    }
    return
  }
  func.func @transform_0(%arg0: i32, %arg1: memref<4xi32, #tpu.memory_space<smem>>, %arg2: memref<2xi32, #tpu.memory_space<smem>>, %arg3: memref<2xi32, #tpu.memory_space<smem>>) -> (i32, i32, i32) {
    %c0_i32 = arith.constant 0 : i32
    %0 = arith.addi %c0_i32, %arg0 : i32
    %1 = arith.index_cast %0 : i32 to index
    %2 = memref.load %arg1[%1] : memref<4xi32, #tpu.memory_space<smem>>
    %c0_i32_0 = arith.constant 0 : i32
    %c0_i32_1 = arith.constant 0 : i32
    %c0_i32_2 = arith.constant 0 : i32
    return %c0_i32_0, %c0_i32_1, %2 : i32, i32, i32
  }
  func.func @transform_1(%arg0: i32, %arg1: memref<4xi32, #tpu.memory_space<smem>>, %arg2: memref<2xi32, #tpu.memory_space<smem>>, %arg3: memref<2xi32, #tpu.memory_space<smem>>) -> (i32, i32, i32) {
    %c2_i32 = arith.constant 2 : i32
    %0 = arith.addi %c2_i32, %arg0 : i32
    %1 = arith.index_cast %0 : i32 to index
    %2 = memref.load %arg1[%1] : memref<4xi32, #tpu.memory_space<smem>>
    %c0_i32 = arith.constant 0 : i32
    %c0_i32_0 = arith.constant 0 : i32
    %c0_i32_1 = arith.constant 0 : i32
    return %c0_i32, %c0_i32_0, %2 : i32, i32, i32
  }
  func.func @transform_2(%arg0: i32, %arg1: memref<4xi32, #tpu.memory_space<smem>>, %arg2: memref<2xi32, #tpu.memory_space<smem>>, %arg3: memref<2xi32, #tpu.memory_space<smem>>) -> (i32, i32) {
    %c0_i32 = arith.constant 0 : i32
    %c0_i32_0 = arith.constant 0 : i32
    %c0_i32_1 = arith.constant 0 : i32
    return %c0_i32, %c0_i32_0 : i32, i32
  }
  func.func @transform_3(%arg0: i32, %arg1: memref<4xi32, #tpu.memory_space<smem>>, %arg2: memref<2xi32, #tpu.memory_space<smem>>, %arg3: memref<2xi32, #tpu.memory_space<smem>>) -> (i32, i32) {
    %c0_i32 = arith.constant 0 : i32
    %c0_i32_0 = arith.constant 0 : i32
    %c0_i32_1 = arith.constant 0 : i32
    return %c0_i32, %c0_i32_0 : i32, i32
  }
  func.func @transform_4(%arg0: i32, %arg1: memref<4xi32, #tpu.memory_space<smem>>, %arg2: memref<2xi32, #tpu.memory_space<smem>>, %arg3: memref<2xi32, #tpu.memory_space<smem>>) -> (i32, i32) {
    %c0_i32 = arith.constant 0 : i32
    %c0_i32_0 = arith.constant 0 : i32
    %c0_i32_1 = arith.constant 0 : i32
    return %c0_i32, %c0_i32_0 : i32, i32
  }
}

</mosaic_0001>

<llo_original>
// kernel: classification_head_forward.1
$region0: #{classification_head_forward.1}
  #allocation0 [shape = 'u32[]', space=smem, size = 0x4, offset = 0x4, fixed_abs, tag = 'smem constant byte address 0x4 - core index']
  #allocation1 [shape = 'u32[144,128]{1,0:T(1,128)}', space=vmem, size = 0x12000, scoped, tag = 'internal scratch']
  #allocation2 [shape = 'f32[2,128]{1,0:T(2,128)}', space=vmem, size = 0x400, scoped, tag = 'scratch operand']
  #allocation3 [shape = 's32[1]{0}', space=sflag, size = 0x4, scoped, tag = 'scoped memory for classification_head_forward.1']
  #allocation4 [shape = 'u8[512]{0}', space=smem, size = 0x200, scoped, tag = 'prefetched SMEM operand 0']
  #allocation5 [shape = 'u8[512]{0}', space=smem, size = 0x200, scoped, tag = 'prefetched SMEM operand 1']
  #allocation6 [shape = 'u8[512]{0}', space=smem, size = 0x200, scoped, tag = 'prefetched SMEM operand 2']
  %s0 = inlined_call_operand.vmem [shape: s32[4], index: 0, kind: input, shape index: {}]
  %s1 = inlined_call_operand.vmem [shape: s32[2], index: 1, kind: input, shape index: {}]
  %s2 = inlined_call_operand.vmem [shape: s32[2], index: 2, kind: input, shape index: {}]
  %s3 = inlined_call_operand.vmem [shape: f32[2,4,256], index: 3, kind: input, shape index: {}]
  %s4 = inlined_call_operand.vmem [shape: f32[2,8,64], index: 4, kind: input, shape index: {}]
  %s5 = inlined_call_operand.vmem [shape: f32[128,128], index: 5, kind: input, shape index: {}]
  %s6 = inlined_call_operand.vmem [shape: f32[1,128], index: 6, kind: input, shape index: {}]
  %s7 = inlined_call_operand.hbm [shape: f32[2,128], index: 7, kind: output, shape index: {}]
  %s8 = sld [smem:[#allocation0]]
  $region65: #{classification_head_forward.1} parent=0
    _
  %s10 = ssub.s32 1, %s8
  %s11 = scalar_select 0, %s10, %s8
  %s12 = sshll.u32 %s0, 4
  %s13 = int_to_ptr.vmem [resolvable:$true] %s12
  %15 = dma.vmem_to_smem %s13, 16, [#allocation4], [#allocation3]
  %s16 = sshll.u32 %s1, 4
  %s17 = int_to_ptr.vmem [resolvable:$true] %s16
  %19 = dma.vmem_to_smem %s17, 16, [#allocation5], [#allocation3]
  %s20 = sshll.u32 %s2, 4
  %s21 = int_to_ptr.vmem [resolvable:$true] %s20
  %23 = dma.vmem_to_smem %s21, 16, [#allocation6], [#allocation3]
  %24 = dma.done [#allocation3], 48
  %25 = sfence
  $region1: #{classification_head_forward.1} parent=0
    #allocation7 [shape = 'u8[1024]{0}', space=vmem, size = 0x400, scoped, tag = 'output window, operand 0, single buffered']
    #allocation8 [shape = 's32[2]{0}', space=sflag, size = 0x8, scoped, tag = 'scoped memory for classification_head_forward.1']
    %26 = vsyncpa [#allocation8], 0
    loop: start=0, step=1, limit=4
    $region2: #{classification_head_forward.1} parent=1 // loop_pre_header
      _
    $region3: #{classification_head_forward.1} parent=1 // loop_header
      %s28 = sphi 0, %s32
      %p29 = scmp.ge.s32.totalorder %s28, 4
      %s40 = sphi 0, %s42
      %s43 = sphi 0, %s40
      %s44 = sphi 0, %s43
      %s60 = sphi 0, %s44
      %s70 = sphi 0, %s72
      %s73 = sphi 0, %s70
      %s74 = sphi 0, %s73
      %s90 = sphi 0, %s74
      %s94 = sphi 0, %s94
      %s96 = sphi 0, %s94
      %s97 = sphi 0, %s96
      %s111 = sphi 0, %s97
      %s115 = sphi 0, %s115
      %s117 = sphi 0, %s115
      %s118 = sphi 0, %s117
      %s132 = sphi 0, %s118
      %s136 = sphi 0, %s136
      %s138 = sphi 0, %s136
      %s139 = sphi 0, %s138
      %s153 = sphi 0, %s139
    $region4: #{classification_head_forward.1} parent=1 // loop_header_branch
      %31 = sbr.rel (%p29) target = $region8
    $region5: #{classification_head_forward.1} parent=1 // loop_body
      %s33 = ssub.s32 %s28, 1
      %s34 = ssub.s32 %s28, 2
      %s35 = sadd.s32 %s28, 1
      %s36 = sld [smem:[#allocation4 + %s28]]
      %s37 = sld [smem:[#allocation4 + %s35]]
      %s38 = ssub.s32 %s36, %s37
      %p39 = scmp.eq.s32.totalorder %s38, 0
      %s41 = sadd.s32 %s40, 1
      %s42 = scalar_select %p39, %s40, %s41
      %p45 = pneg %p39
      %p46 = scmp.eq.s32.totalorder %s28, 1
      %p47 = por %p45, %p46
      %p48 = scmp.ne.s32.totalorder %s40, %s43
      %p49 = scmp.eq.s32.totalorder %s28, 0
      %p50 = por %p48, %p49
      %p51 = scmp.ne.s32.totalorder %s40, %s43
      %p52 = scmp.eq.s32.totalorder %s33, 1
      %p53 = por %p51, %p52
      %p54 = scmp.ne.s32.totalorder %s43, %s44
      %p55 = scmp.eq.s32.totalorder %s33, 0
      %p56 = por %p54, %p55
      %p57 = scmp.ne.s32.totalorder %s43, %s44
      %p58 = scmp.eq.s32.totalorder %s34, 1
      %p59 = por %p57, %p58
      %p61 = scmp.ne.s32.totalorder %s44, %s60
      %p62 = scmp.eq.s32.totalorder %s34, 0
      %p63 = por %p61, %p62
      %s64 = sadd.s32 %s28, 2
      %s65 = sld [smem:[#allocation4 + %s64]]
      %s66 = sadd.s32 %s35, 2
      %s67 = sld [smem:[#allocation4 + %s66]]
      %s68 = ssub.s32 %s65, %s67
      %p69 = scmp.eq.s32.totalorder %s68, 0
      %s71 = sadd.s32 %s70, 1
      %s72 = scalar_select %p69, %s70, %s71
      %p75 = pneg %p69
      %p76 = scmp.eq.s32.totalorder %s28, 1
      %p77 = por %p75, %p76
      %p78 = scmp.ne.s32.totalorder %s70, %s73
      %p79 = scmp.eq.s32.totalorder %s28, 0
      %p80 = por %p78, %p79
      %p81 = scmp.ne.s32.totalorder %s70, %s73
      %p82 = scmp.eq.s32.totalorder %s33, 1
      %p83 = por %p81, %p82
      %p84 = scmp.ne.s32.totalorder %s73, %s74
      %p85 = scmp.eq.s32.totalorder %s33, 0
      %p86 = por %p84, %p85
      %p87 = scmp.ne.s32.totalorder %s73, %s74
      %p88 = scmp.eq.s32.totalorder %s34, 1
      %p89 = por %p87, %p88
      %p91 = scmp.ne.s32.totalorder %s74, %s90
      %p92 = scmp.eq.s32.totalorder %s34, 0
      %p93 = por %p91, %p92
      %s95 = sadd.s32 %s94, 1
      %p98 = scmp.eq.s32.totalorder %s28, 1
      %p99 = scmp.ne.s32.totalorder %s94, %s96
      %p100 = scmp.eq.s32.totalorder %s28, 0
      %p101 = por %p99, %p100
      %p102 = scmp.ne.s32.totalorder %s94, %s96
      %p103 = scmp.eq.s32.totalorder %s33, 1
      %p104 = por %p102, %p103
      %p105 = scmp.ne.s32.totalorder %s96, %s97
      %p106 = scmp.eq.s32.totalorder %s33, 0
      %p107 = por %p105, %p106
      %p108 = scmp.ne.s32.totalorder %s96, %s97
      %p109 = scmp.eq.s32.totalorder %s34, 1
      %p110 = por %p108, %p109
      %p112 = scmp.ne.s32.totalorder %s97, %s111
      %p113 = scmp.eq.s32.totalorder %s34, 0
      %p114 = por %p112, %p113
      %s116 = sadd.s32 %s115, 1
      %p119 = scmp.eq.s32.totalorder %s28, 1
      %p120 = scmp.ne.s32.totalorder %s115, %s117
      %p121 = scmp.eq.s32.totalorder %s28, 0
      %p122 = por %p120, %p121
      %p123 = scmp.ne.s32.totalorder %s115, %s117
      %p124 = scmp.eq.s32.totalorder %s33, 1
      %p125 = por %p123, %p124
      %p126 = scmp.ne.s32.totalorder %s117, %s118
      %p127 = scmp.eq.s32.totalorder %s33, 0
      %p128 = por %p126, %p127
      %p129 = scmp.ne.s32.totalorder %s117, %s118
      %p130 = scmp.eq.s32.totalorder %s34, 1
      %p131 = por %p129, %p130
      %p133 = scmp.ne.s32.totalorder %s118, %s132
      %p134 = scmp.eq.s32.totalorder %s34, 0
      %p135 = por %p133, %p134
      %s137 = sadd.s32 %s136, 1
      %p140 = scmp.eq.s32.totalorder %s28, 1
      %p141 = scmp.ne.s32.totalorder %s136, %s138
      %p142 = scmp.eq.s32.totalorder %s28, 0
      %p143 = por %p141, %p142
      %p144 = scmp.ne.s32.totalorder %s136, %s138
      %p145 = scmp.eq.s32.totalorder %s33, 1
      %p146 = por %p144, %p145
      %p147 = scmp.ne.s32.totalorder %s138, %s139
      %p148 = scmp.eq.s32.totalorder %s33, 0
      %p149 = por %p147, %p148
      %p150 = scmp.ne.s32.totalorder %s138, %s139
      %p151 = scmp.eq.s32.totalorder %s34, 1
      %p152 = por %p150, %p151
      %p154 = scmp.ne.s32.totalorder %s139, %s153
      %p155 = scmp.eq.s32.totalorder %s34, 0
      %p156 = por %p154, %p155
      %p157 = scmp.le.s32.totalorder 1, %s28
      %p158 = scmp.lt.s32.totalorder %s28, 3
      %p159 = pnand %p157, %p158
      %p160 = pneg %p159
      // Predicated region
      $region9: #{classification_head_forward.1} parent=5 // pred_check
        _
      $region10: #{classification_head_forward.1} parent=5 // pred_check_branch
        %162 = sbr.rel (%p159) target = $region12
      $region11: #{classification_head_forward.1} parent=5 // pred_region
        %s163 = ssub.s32 %s28, 1
        // Predicated region
        $region13: #{classification_head_forward.1} parent=11 // pred_check
          %p164 = pneg %p107
        $region14: #{classification_head_forward.1} parent=11 // pred_check_branch
          %166 = sbr.rel (%p164) target = $region16
        $region15: #{classification_head_forward.1} parent=11 // pred_region
          _
        $region16: #{classification_head_forward.1} parent=11 // pred_fallthru
          _
        // Predicated region
        $region17: #{classification_head_forward.1} parent=11 // pred_check
          %p167 = pneg %p128
        $region18: #{classification_head_forward.1} parent=11 // pred_check_branch
          %169 = sbr.rel (%p167) target = $region20
        $region19: #{classification_head_forward.1} parent=11 // pred_region
          _
        $region20: #{classification_head_forward.1} parent=11 // pred_fallthru
          _
      $region12: #{classification_head_forward.1} parent=5 // pred_fallthru
        _
      %p170 = scmp.lt.s32.totalorder %s28, 2
      // Predicated region
      $region21: #{classification_head_forward.1} parent=5 // pred_check
        %p171 = pneg %p170
      $region22: #{classification_head_forward.1} parent=5 // pred_check_branch
        %173 = sbr.rel (%p171) target = $region24
      $region23: #{classification_head_forward.1} parent=5 // pred_region
        // Predicated region
        $region25: #{classification_head_forward.1} parent=23 // pred_check
          %p174 = pneg %p50
        $region26: #{classification_head_forward.1} parent=23 // pred_check_branch
          %176 = sbr.rel (%p174) target = $region28
        $region27: #{classification_head_forward.1} parent=23 // pred_region
          %s177 = sld [smem:[#allocation4 + %s28]]
          %s178 = smul.u32 2, %s177
          %p179 = scmp.lt.s32.totalorder %s178, 1
          %s180 = scalar_select %p179, %s178, 1
          %s181 = smul.addr %s180, 4
          %s182 = scalar_lea.vmem %s3, %s181
          %s183 = sld [smem:[#allocation4 + %s28]]
          %s184 = smul.u32 2, %s183
        $region28: #{classification_head_forward.1} parent=23 // pred_fallthru
          _
        // Predicated region
        $region29: #{classification_head_forward.1} parent=23 // pred_check
          %p185 = pneg %p80
        $region30: #{classification_head_forward.1} parent=23 // pred_check_branch
          %187 = sbr.rel (%p185) target = $region32
        $region31: #{classification_head_forward.1} parent=23 // pred_region
          %s188 = sadd.s32 %s28, 2
          %s189 = sld [smem:[#allocation4 + %s188]]
          %p190 = scmp.lt.s32.totalorder %s189, 0
          %s191 = scalar_select %p190, %s189, 0
          %s192 = smul.addr %s191, 8
          %s193 = scalar_lea.vmem %s4, %s192
          %s194 = sadd.s32 %s28, 2
          %s195 = sld [smem:[#allocation4 + %s194]]
        $region32: #{classification_head_forward.1} parent=23 // pred_fallthru
          _
      $region24: #{classification_head_forward.1} parent=5 // pred_fallthru
        _
      %p196 = scmp.le.s32.totalorder 1, %s28
      %p197 = scmp.lt.s32.totalorder %s28, 3
      %p198 = pnand %p196, %p197
      %p199 = pneg %p198
      // Predicated region
      $region33: #{classification_head_forward.1} parent=5 // pred_check
        _
      $region34: #{classification_head_forward.1} parent=5 // pred_check_branch
        %201 = sbr.rel (%p198) target = $region36
      $region35: #{classification_head_forward.1} parent=5 // pred_region
        %s202 = ssub.s32 %s28, 1
        %s203 = sld [smem:[#allocation4 + %s33]]
        %s204 = smul.u32 2, %s203
        %p205 = scmp.lt.s32.totalorder %s204, 1
        %s206 = scalar_select %p205, %s204, 1
        %s207 = smul.addr %s206, 4
        %s208 = scalar_lea.vmem %s3, %s207
        %p209 = pneg %p56
        %p210 = pneg %p53
        %s211 = sadd.s32 %s33, 2
        %s212 = sld [smem:[#allocation4 + %s211]]
        %p213 = scmp.lt.s32.totalorder %s212, 0
        %s214 = scalar_select %p213, %s212, 0
        %s215 = smul.addr %s214, 8
        %s216 = scalar_lea.vmem %s4, %s215
        %p217 = pneg %p86
        %p218 = pneg %p83
        %p219 = pneg %p107
        %p220 = pneg %p104
        %p221 = pneg %p128
        %p222 = pneg %p125
        %p223 = pneg %p149
        %p224 = pneg %p146
        %s225 = sld [smem:[#allocation4 + %s33]]
        %s226 = smul.u32 2, %s225
        %p227 = scmp.lt.s32.totalorder %s226, 1
        %s228 = scalar_select %p227, %s226, 1
        %s229 = smul.addr %s228, 4
        %s230 = scalar_lea.vmem %s3, %s229
        %s231 = sld [smem:[#allocation4 + %s33]]
        %s232 = smul.u32 2, %s231
        %s233 = sadd.s32 %s33, 2
        %s234 = sld [smem:[#allocation4 + %s233]]
        %p235 = scmp.lt.s32.totalorder %s234, 0
        %s236 = scalar_select %p235, %s234, 0
        %s237 = smul.addr %s236, 8
        %s238 = scalar_lea.vmem %s4, %s237
        %s239 = sadd.s32 %s33, 2
        %s240 = sld [smem:[#allocation4 + %s239]]
        %p241 = scmp.eq.s32.totalorder %s33, 0
        // Predicated region
        $region37: #{classification_head_forward.1} parent=35 // pred_check
          %p242 = pneg %p241
        $region38: #{classification_head_forward.1} parent=35 // pred_check_branch
          %244 = sbr.rel (%p242) target = $region40
        $region39: #{classification_head_forward.1} parent=35 // pred_region
          %245 = vst [vmem:[#allocation2] sm:$0x3] 0.0
        $region40: #{classification_head_forward.1} parent=35 // pred_fallthru
          _
        %s246 = sld [smem:[#allocation5 + %s33]]
        %p247 = scmp.eq.s32.totalorder %s246, 0
        // Predicated region
        $region41: #{classification_head_forward.1} parent=35 // pred_check
          %p248 = pneg %p247
        $region42: #{classification_head_forward.1} parent=35 // pred_check_branch
          %250 = sbr.rel (%p248) target = $region44
        $region43: #{classification_head_forward.1} parent=35 // pred_region
          %v251 = vld [vmem:[%s230] sm:$0xff]
          %v252 = vld [vmem:[%s230 + $0x8] sm:$0xff]
          %v255 = vcombine.high %v251, %v251
          %v256 = vcombine.high %v252, %v252
          %vm259 = vcmask 1043456
          %v260 = vsel %vm259, %v251, 0.0
          %v261 = vsel %vm259, %v255, 0.0
          %v262 = vadd.f32 %v260, %v261
          %263 = vadd.xlane.f32.xlu0 %v262
          %v264 = vpop.xlane.xlu0 %263
          %v265 = vsel %vm259, %v252, 0.0
          %v266 = vsel %vm259, %v256, 0.0
          %v267 = vadd.f32 %v265, %v266
          %268 = vadd.xlane.f32.xlu0 %v267
          %v269 = vpop.xlane.xlu0 %268
          %v270 = vmul.f32 %v264, 0.00390625
          %v271 = vmul.f32 %v269, 0.00390625
          %v272 = vld [vmem:[#allocation2] sm:$0x3]
          %v275 = vlaneseq
          %v276 = vand.u32 %v275, 127
          %v277 = vlaneseq
          %v278 = vshrl.u32 %v277, 7
          %v279 = vsub.s32 %v276, %v278
          %v280 = vrot.slane %v270, %v279
          %v281 = vlaneseq
          %v282 = vshrl.u32 %v281, 7
          %v283 = vsub.s32 %v276, %v282
          %v284 = vrot.slane %v271, %v283
          %vm285 = vcmask 1041409
          %v286 = vsel %vm285, %v284, %v280
          %v288 = vadd.f32 %v272, %v286
          %vm289 = vcmask 25600
          %290 = vst.msk [vmem:[#allocation2] sm:$0x3] %vm289, %v288
        $region44: #{classification_head_forward.1} parent=35 // pred_fallthru
          _
        %p291 = scmp.eq.s32.totalorder %s246, 1
        // Predicated region
        $region45: #{classification_head_forward.1} parent=35 // pred_check
          %p292 = pneg %p291
        $region46: #{classification_head_forward.1} parent=35 // pred_check_branch
          %294 = sbr.rel (%p292) target = $region48
        $region47: #{classification_head_forward.1} parent=35 // pred_region
          %v295 = vld [vmem:[%s238] sm:$0xff]
          %v296 = vld [vmem:[%s238 + $0x8] sm:$0xff]
          %vm297 = vcmask 523264
          %v298 = vsel %vm297, %v295, 0.0
          %299 = vadd.xlane.f32.xlu0 %v298
          %v300 = vpop.xlane.xlu0 %299
          %v301 = vsel %vm297, %v296, 0.0
          %302 = vadd.xlane.f32.xlu0 %v301
          %v303 = vpop.xlane.xlu0 %302
          %v304 = vmul.f32 %v300, 0.015625
          %v305 = vmul.f32 %v303, 0.015625
          %v306 = vld [vmem:[#allocation2] sm:$0x3]
          %v309 = vlaneseq
          %v310 = vand.u32 %v309, 127
          %v311 = vadd.s32 %v310, 4294967292
          %v312 = vlaneseq
          %v313 = vshrl.u32 %v312, 7
          %v314 = vsub.s32 %v311, %v313
          %v315 = vrot.slane %v304, %v314
          %v316 = vlaneseq
          %v317 = vshrl.u32 %v316, 7
          %v318 = vsub.s32 %v311, %v317
          %v319 = vrot.slane %v305, %v318
          %vm320 = vcmask 1041409
          %v321 = vsel %vm320, %v319, %v315
          %v323 = vadd.f32 %v306, %v321
          %vm324 = vcmask 91168
          %325 = vst.msk [vmem:[#allocation2] sm:$0x3] %vm324, %v323
        $region48: #{classification_head_forward.1} parent=35 // pred_fallthru
          _
        %p326 = scmp.eq.s32.totalorder %s33, 1
        // Predicated region
        $region49: #{classification_head_forward.1} parent=35 // pred_check
          %p327 = pneg %p326
        $region50: #{classification_head_forward.1} parent=35 // pred_check_branch
          %329 = sbr.rel (%p327) target = $region52
        $region51: #{classification_head_forward.1} parent=35 // pred_region
          %v330 = vld [vmem:[#allocation2] sm:$0x3]
          %v331 = vld [vmem:[%s5] sm:$0xff]
          %v332 = vld [vmem:[%s5 + $0x8] sm:$0xff]
          %v333 = vld [vmem:[%s5 + $0x10] sm:$0xff]
          %v334 = vld [vmem:[%s5 + $0x18] sm:$0xff]
          %v335 = vld [vmem:[%s5 + $0x20] sm:$0xff]
          %v336 = vld [vmem:[%s5 + $0x28] sm:$0xff]
          %v337 = vld [vmem:[%s5 + $0x30] sm:$0xff]
          %v338 = vld [vmem:[%s5 + $0x38] sm:$0xff]
          %v339 = vld [vmem:[%s5 + $0x40] sm:$0xff]
          %v340 = vld [vmem:[%s5 + $0x48] sm:$0xff]
          %v341 = vld [vmem:[%s5 + $0x50] sm:$0xff]
          %v342 = vld [vmem:[%s5 + $0x58] sm:$0xff]
          %v343 = vld [vmem:[%s5 + $0x60] sm:$0xff]
          %v344 = vld [vmem:[%s5 + $0x68] sm:$0xff]
          %v345 = vld [vmem:[%s5 + $0x70] sm:$0xff]
          %v346 = vld [vmem:[%s5 + $0x78] sm:$0xff]
          %v347 = vld [vmem:[%s6] sm:$0x1]
          %v349 = vlaneseq
          %v350 = vshrl.u32 %v349, 7
          %v351 = vsub.s32 0, %v350
          %v352 = vrot.slane %v347, %v351
          %354 = vmatprep.subr.mxu0 0.0
          %355 = vmatpush1.msra.mxu0 %v331
          %356 = vmatprep.subr.mxu0 0.0
          %357 = vmatpush1.msra.mxu0 %v332
          %358 = vmatprep.subr.mxu0 0.0
          %359 = vmatpush1.msra.mxu0 %v333
          %360 = vmatprep.subr.mxu0 0.0
          %361 = vmatpush1.msra.mxu0 %v334
          %362 = vmatprep.subr.mxu0 0.0
          %363 = vmatpush1.msra.mxu0 %v335
          %364 = vmatprep.subr.mxu0 0.0
          %365 = vmatpush1.msra.mxu0 %v336
          %366 = vmatprep.subr.mxu0 0.0
          %367 = vmatpush1.msra.mxu0 %v337
          %368 = vmatprep.subr.mxu0 0.0
          %369 = vmatpush1.msra.mxu0 %v338
          %370 = vmatprep.subr.mxu0 0.0
          %371 = vmatpush1.msra.mxu0 %v339
          %372 = vmatprep.subr.mxu0 0.0
          %373 = vmatpush1.msra.mxu0 %v340
          %374 = vmatprep.subr.mxu0 0.0
          %375 = vmatpush1.msra.mxu0 %v341
          %376 = vmatprep.subr.mxu0 0.0
          %377 = vmatpush1.msra.mxu0 %v342
          %378 = vmatprep.subr.mxu0 0.0
          %379 = vmatpush1.msra.mxu0 %v343
          %380 = vmatprep.subr.mxu0 0.0
          %381 = vmatpush1.msra.mxu0 %v344
          %382 = vmatprep.subr.mxu0 0.0
          %383 = vmatpush1.msra.mxu0 %v345
          %384 = vmatprep.subr.mxu0 0.0
          %385 = vmatpush1.msra.mxu0 %v346
          %386 = vmatprep.subr.mxu0 0.0
          %387 = vmatpush1.msra.mxu0 0.0
          %388 = vmatprep.subr.mxu0 0.0
          %389 = vmatpush1.msra.mxu0 0.0
          %390 = vmatprep.subr.mxu0 0.0
          %391 = vmatpush1.msra.mxu0 0.0
          %392 = vmatprep.subr.mxu0 0.0
          %393 = vmatpush1.msra.mxu0 0.0
          %394 = vmatprep.subr.mxu0 0.0
          %395 = vmatpush1.msra.mxu0 0.0
          %396 = vmatprep.subr.mxu0 0.0
          %397 = vmatpush1.msra.mxu0 0.0
          %398 = vmatprep.subr.mxu0 0.0
          %399 = vmatpush1.msra.mxu0 0.0
          %400 = vmatprep.subr.mxu0 0.0
          %401 = vmatpush1.msra.mxu0 0.0
          %402 = vmatprep.subr.mxu0 0.0
          %403 = vmatpush1.msra.mxu0 0.0
          %404 = vmatprep.subr.mxu0 0.0
          %405 = vmatpush1.msra.mxu0 0.0
          %406 = vmatprep.subr.mxu0 0.0
          %407 = vmatpush1.msra.mxu0 0.0
          %408 = vmatprep.subr.mxu0 0.0
          %409 = vmatpush1.msra.mxu0 0.0
          %410 = vmatprep.subr.mxu0 0.0
          %411 = vmatpush1.msra.mxu0 0.0
          %412 = vmatprep.subr.mxu0 0.0
          %413 = vmatpush1.msra.mxu0 0.0
          %414 = vmatprep.subr.mxu0 0.0
          %415 = vmatpush1.msra.mxu0 0.0
          %416 = vmatprep.subr.mxu0 0.0
          %417 = vmatpush1.msra.mxu0 0.0
          %418 = vmatprep.mubr.f32.mxu0 0.0
          %419 = vmatmul.mubr.f32.gmra.mrb[0].mxu0 %v330
          %v420 = vpop.f32.mrb[0].mxu0
          %v421 = vadd.f32 %v352, %v420
          %v422 = vpop.f32.mrb[0].mxu0
          %423 = vdwg.mxu0
          %424 = vst [vmem:[#allocation7] sm:$0x3] %v421
        $region52: #{classification_head_forward.1} parent=35 // pred_fallthru
          _
        // Predicated region
        $region53: #{classification_head_forward.1} parent=35 // pred_check
          %p425 = pneg %p146
        $region54: #{classification_head_forward.1} parent=35 // pred_check_branch
          %427 = sbr.rel (%p425) target = $region56
        $region55: #{classification_head_forward.1} parent=35 // pred_region
          %s429 = ssub.s32 32, 32
          %430 = vsyncadd [#allocation8], %s429
          %s432 = sshll.u32 [#allocation7], 4
          %s433 = int_to_ptr.vmem [resolvable:$true] %s432
          %435 = dma.vmem_to_hbm [thread:$0]  %s433, 32, %s7, [#allocation8]
        $region56: #{classification_head_forward.1} parent=35 // pred_fallthru
          _
        // Predicated region
        $region57: #{classification_head_forward.1} parent=35 // pred_check
          %p436 = pneg %p146
        $region58: #{classification_head_forward.1} parent=35 // pred_check_branch
          %438 = sbr.rel (%p436) target = $region60
        $region59: #{classification_head_forward.1} parent=35 // pred_region
          %439 = dma.done [#allocation8], 32
        $region60: #{classification_head_forward.1} parent=35 // pred_fallthru
          _
      $region36: #{classification_head_forward.1} parent=5 // pred_fallthru
        _
      %p440 = scmp.le.s32.totalorder 2, %s28
      // Predicated region
      $region61: #{classification_head_forward.1} parent=5 // pred_check
        %p441 = pneg %p440
      $region62: #{classification_head_forward.1} parent=5 // pred_check_branch
        %443 = sbr.rel (%p441) target = $region64
      $region63: #{classification_head_forward.1} parent=5 // pred_region
        %s444 = ssub.s32 %s28, 2
      $region64: #{classification_head_forward.1} parent=5 // pred_fallthru
        _
    $region6: #{classification_head_forward.1} parent=1 // loop_footer
      %s32 = sadd.s32 1, %s28
    $region7: #{classification_head_forward.1} parent=1 // loop_footer_branch
      %27 = sbr.rel target = $region3
    $region8: #{classification_head_forward.1} parent=1 // loop_exit
      _
    %445 = vsyncpa [#allocation8], 1
    %s446 = scalar_lea.sflag [#allocation8], 1
    %447 = vsyncpa %s446, 1

</llo_original>
